<compile_context>
chip_gen: v5e
topology: v5e:2x2
jax: 0.10.0
libtpu: 0.0.40
codegen_flags: <defaults>
</compile_context>

<pallas_src>
import jax
import jax.numpy as jnp
from jax.experimental import pallas as pl
from jax.experimental.pallas import tpu as pltpu


def _passcell2_seq_kernel(px_ref, h0_ref, wh_ref, wo_ref,
                          y_ref, hout_ref, h_scr):
    """One grid step == one timestep of the recurrence.

    px_ref  : (1, 4, B, H)  precomputed x-projections (+bias) for this step:
              slot 0 -> linear1 x-part, slots 1..3 -> linear2 xs/os/hs x-parts.
    h0_ref  : (B, H)        initial hidden state (resident).
    wh_ref  : (4, H, H)     h-weights: slot 0 = W1h, slots 1..3 = W2h blocks.
    wo_ref  : (3, H, H)     o-weights: W2o blocks for xs/os/hs.
    y_ref   : (1, B, H)     per-step output y_t = os.
    hout_ref: (B, H)        final hidden state (written on last step).
    h_scr   : (B, H) f32    VMEM scratch carrying h across grid steps.
    """
    t = pl.program_id(0)

    @pl.when(t == 0)
    def _():
        h_scr[...] = h0_ref[...].astype(jnp.float32)

    h = h_scr[...]

    # linear1 on cat([x, h]) -> sigmoid ; x-part precomputed in px slot 0.
    z1 = px_ref[0, 0] + jnp.dot(h, wh_ref[0], preferred_element_type=jnp.float32)
    o = jax.nn.sigmoid(z1)

    # linear2 on cat([x, o, h]), split by OUTPUT block (lane-dense results).
    xs = jax.nn.sigmoid(px_ref[0, 1]
                        + jnp.dot(o, wo_ref[0], preferred_element_type=jnp.float32)
                        + jnp.dot(h, wh_ref[1], preferred_element_type=jnp.float32))
    os_ = jax.nn.sigmoid(px_ref[0, 2]
                         + jnp.dot(o, wo_ref[1], preferred_element_type=jnp.float32)
                         + jnp.dot(h, wh_ref[2], preferred_element_type=jnp.float32))
    hs = jax.nn.sigmoid(px_ref[0, 3]
                        + jnp.dot(o, wo_ref[2], preferred_element_type=jnp.float32)
                        + jnp.dot(h, wh_ref[3], preferred_element_type=jnp.float32))

    h_new = xs + os_ + hs
    h_scr[...] = h_new
    y_ref[0] = os_.astype(y_ref.dtype)

    @pl.when(t == pl.num_programs(0) - 1)
    def _():
        hout_ref[...] = h_new.astype(hout_ref.dtype)


def prepare_params(params, input_dim, hidden):
    """One-time weight transpose / split (do NOT call per forward step).

    PyTorch nn.Linear weights are [out, in]. We transpose and split so the
    kernel never concatenates along lanes and never slices z2 along lanes:
      linear1([x,h])   = x @ W1x + h @ W1h + b1
      linear2([x,o,h]) = x @ W2x + o @ W2o + h @ W2h + b2   (split by output)
    """
    I, H = input_dim, hidden
    w1t = params["w1"].T                    # (I+H, H)
    w1x, w1h = w1t[:I], w1t[I:]             # (I,H), (H,H)
    w2t = params["w2"].T                    # (I+2H, 3H)
    w2x = w2t[:I]                           # (I, 3H)
    w2o = w2t[I:I + H]                      # (H, 3H)
    w2h = w2t[I + H:]                       # (H, 3H)
    b1, b2 = params["b1"], params["b2"]

    # x-projection weights/biases, stacked by "output slot" (1 + 3 blocks).
    wx_all = jnp.stack([w1x, w2x[:, :H], w2x[:, H:2 * H], w2x[:, 2 * H:]], 0)   # (4,I,H)
    bx_all = jnp.stack([b1, b2[:H], b2[H:2 * H], b2[2 * H:]], 0)                # (4,H)
    # h-dependent weights (slot 0 = W1h, slots 1..3 = W2h output blocks).
    wh_all = jnp.stack([w1h, w2h[:, :H], w2h[:, H:2 * H], w2h[:, 2 * H:]], 0)   # (4,H,H)
    # o-dependent weights (W2o output blocks).
    wo_all = jnp.stack([w2o[:, :H], w2o[:, H:2 * H], w2o[:, 2 * H:]], 0)        # (3,H,H)
    return {"wx": wx_all.astype(jnp.float32), "bx": bx_all.astype(jnp.float32),
            "wh": wh_all.astype(jnp.float32), "wo": wo_all.astype(jnp.float32)}


def passcell_2_v2_scan(x_seq, cur_state, prep):
    """Run the cell over a sequence x_seq: (T, B, I). Returns (y_seq, (c, h_T))."""
    c, h0 = cur_state
    T, B, _ = x_seq.shape
    H = h0.shape[-1]

    # Hoisted, parallel-over-T GEMM for all x-dependent parts (+ folded bias):
    # px[t, k] = x_t @ Wx[k] + bx[k]  -> (T, 4, B, H)
    px = (jnp.einsum("tbi,kih->tkbh", x_seq.astype(jnp.float32), prep["wx"],
                     preferred_element_type=jnp.float32)
          + prep["bx"][None, :, None, :])

    y_seq, h_final = pl.pallas_call(
        _passcell2_seq_kernel,
        out_shape=(jax.ShapeDtypeStruct((T, B, H), jnp.float32),
                   jax.ShapeDtypeStruct((B, H), jnp.float32)),
        grid=(T,),
        in_specs=[
            pl.BlockSpec((1, 4, B, H), lambda t: (t, 0, 0, 0)),   # streamed per step
            pl.BlockSpec((B, H), lambda t: (0, 0)),               # h0, resident
            pl.BlockSpec((4, H, H), lambda t: (0, 0, 0)),         # Wh, resident
            pl.BlockSpec((3, H, H), lambda t: (0, 0, 0)),         # Wo, resident
        ],
        out_specs=(pl.BlockSpec((1, B, H), lambda t: (t, 0, 0)),  # y_t streamed out
                   pl.BlockSpec((B, H), lambda t: (0, 0))),       # final h, resident
        scratch_shapes=[pltpu.VMEM((B, H), jnp.float32)],         # recurrent h carry
        compiler_params=pltpu.CompilerParams(
            dimension_semantics=("arbitrary",)),                  # time is sequential
    )(px, h0.astype(jnp.float32), prep["wh"], prep["wo"])

    return y_seq, (c, h_final)


def passcell_2_v2_forward(x, cur_state, prep):
    """Single-step API matching PASScell_2_v2.forward (T = 1)."""
    y_seq, (c, h_new) = passcell_2_v2_scan(x[None], cur_state, prep)
    return y_seq[0], (c, h_new)


def _reference_step(x, h, params):
    """Pure-JAX single-step reference (mirrors the PyTorch forward)."""
    H = h.shape[1]
    comb1 = jnp.concatenate([x, h], axis=1)
    o = jax.nn.sigmoid(comb1 @ params["w1"].T + params["b1"])
    comb2 = jnp.concatenate([x, o, h], axis=1)
    z2 = comb2 @ params["w2"].T + params["b2"]
    xs = jax.nn.sigmoid(z2[:, :H])
    os_ = jax.nn.sigmoid(z2[:, H:2 * H])
    hs = jax.nn.sigmoid(z2[:, 2 * H:])
    return os_, xs + os_ + hs


if __name__ == "__main__":
    key = jax.random.PRNGKey(0)
    B, input_dim, hidden, T = 8, 4, 32, 16

    k = jax.random.split(key, 6)
    # Deterministic synthetic parameters (nn.Linear shapes: [out, in]).
    params = {
        "w1": jax.random.normal(k[0], (hidden, input_dim + hidden), jnp.float32) * 0.1,
        "b1": jax.random.normal(k[1], (hidden,), jnp.float32) * 0.1,
        "w2": jax.random.normal(k[2], (3 * hidden, input_dim + 2 * hidden), jnp.float32) * 0.1,
        "b2": jax.random.normal(k[3], (3 * hidden,), jnp.float32) * 0.1,
    }
    prep = prepare_params(params, input_dim, hidden)   # one-time weight prep

    x_seq = jax.random.normal(k[4], (T, B, input_dim), jnp.float32)
    h0 = jnp.zeros((B, hidden), jnp.float32)           # init_hidden: h = zeros, c = None
    c0 = None

    # ---- full-sequence kernel (time loop inside the kernel) ----
    y_seq, (c_out, h_out) = jax.jit(passcell_2_v2_scan)(x_seq, (c0, h0), prep)
    y_seq = jax.block_until_ready(y_seq)
    h_out = jax.block_until_ready(h_out)

    # reference: Python loop of the single-step module semantics
    h_ref = h0
    y_refs = []
    for t in range(T):
        y_t, h_ref = _reference_step(x_seq[t], h_ref, params)
        y_refs.append(y_t)
    y_ref = jnp.stack(y_refs, axis=0)

    assert c_out is None
    assert jnp.allclose(y_seq, y_ref, atol=1e-4), "y_seq mismatch vs reference"
    assert jnp.allclose(h_out, h_ref, atol=1e-4), "h_out mismatch vs reference"

    # ---- single-step API (matches the module's forward signature) ----
    y1, (c1, h1) = passcell_2_v2_forward(x_seq[0], (c0, h0), prep)
    y1 = jax.block_until_ready(y1)
    y1_ref, h1_ref = _reference_step(x_seq[0], h0, params)
    assert jnp.allclose(y1, y1_ref, atol=1e-5), "single-step y mismatch"
    assert jnp.allclose(h1, h1_ref, atol=1e-5), "single-step h mismatch"
    assert c1 is None

    print("KERNEL_OK")
</pallas_src>

<mosaic_0001>
module attributes {stable_mosaic.version = 11 : i64} {
  func.func @_passcell2_seq_kernel(%arg0: i32, %arg1: memref<1x4x8x32xf32, #tpu.memory_space<vmem>>, %arg2: memref<8x32xf32, #tpu.memory_space<vmem>>, %arg3: memref<4x32x32xf32, #tpu.memory_space<vmem>>, %arg4: memref<3x32x32xf32, #tpu.memory_space<vmem>>, %arg5: memref<1x8x32xf32, #tpu.memory_space<vmem>>, %arg6: memref<8x32xf32, #tpu.memory_space<vmem>>, %arg7: memref<8x32xf32, #tpu.memory_space<vmem>>) attributes {dimension_semantics = [#tpu.dimension_semantics<arbitrary>], iteration_bounds = array<i64: 16>, scalar_prefetch = 0 : i64, scratch_operands = 1 : i64, tpu.core_type = #tpu.core_type<tc>, window_params = [{transform_indices = @transform_0, window_bounds = array<i64: 1, 4, 8, 32>}, {pipeline_mode = #tpu.pipeline_mode<synchronous>, transform_indices = @transform_1, window_bounds = array<i64: 8, 32>}, {pipeline_mode = #tpu.pipeline_mode<synchronous>, transform_indices = @transform_2, window_bounds = array<i64: 4, 32, 32>}, {pipeline_mode = #tpu.pipeline_mode<synchronous>, transform_indices = @transform_3, window_bounds = array<i64: 3, 32, 32>}, {transform_indices = @transform_4, window_bounds = array<i64: 1, 8, 32>}, {pipeline_mode = #tpu.pipeline_mode<synchronous>, transform_indices = @transform_5, window_bounds = array<i64: 8, 32>}]} {
    %c0_i32 = arith.constant 0 : i32
    %0 = arith.cmpi eq, %arg0, %c0_i32 : i32
    %1 = arith.extui %0 : i1 to i32
    %c0_i32_0 = arith.constant 0 : i32
    %2 = arith.cmpi ne, %1, %c0_i32_0 : i32
    scf.if %2 {
      %c0_52 = arith.constant 0 : index
      %c0_53 = arith.constant 0 : index
      %69 = vector.load %arg2[%c0_52, %c0_53] : memref<8x32xf32, #tpu.memory_space<vmem>>, vector<8x32xf32>
      %c0_54 = arith.constant 0 : index
      %c0_55 = arith.constant 0 : index
      %70 = vector.load %arg7[%c0_54, %c0_55] : memref<8x32xf32, #tpu.memory_space<vmem>>, vector<8x32xf32>
      tpu.vector_store %arg7[%c0_54, %c0_55], %69 {strides = array<i32>} : memref<8x32xf32, #tpu.memory_space<vmem>>, vector<8x32xf32>,
    } else {
    }
    %c0 = arith.constant 0 : index
    %c0_1 = arith.constant 0 : index
    %3 = vector.load %arg7[%c0, %c0_1] : memref<8x32xf32, #tpu.memory_space<vmem>>, vector<8x32xf32>
    %c0_2 = arith.constant 0 : index
    %c0_3 = arith.constant 0 : index
    %c0_4 = arith.constant 0 : index
    %c0_5 = arith.constant 0 : index
    %4 = vector.load %arg1[%c0_2, %c0_3, %c0_4, %c0_5] : memref<1x4x8x32xf32, #tpu.memory_space<vmem>>, vector<1x1x8x32xf32>
    %5 = vector.shape_cast %4 : vector<1x1x8x32xf32> to vector<8x32xf32>
    %c0_6 = arith.constant 0 : index
    %c0_7 = arith.constant 0 : index
    %c0_8 = arith.constant 0 : index
    %6 = vector.load %arg3[%c0_6, %c0_7, %c0_8] : memref<4x32x32xf32, #tpu.memory_space<vmem>>, vector<1x32x32xf32>
    %7 = vector.shape_cast %6 : vector<1x32x32xf32> to vector<32x32xf32>
    %cst = arith.constant dense<0.000000e+00> : vector<8x32xf32>
    %8 = tpu.matmul %3, %7, %cst {dimension_numbers = #tpu.dot_dimension_numbers<[1], [0], [0], [1], [0, 0, 1, 1], [], []>} : vector<8x32xf32>, vector<32x32xf32>, vector<8x32xf32> -> vector<8x32xf32>
    %9 = arith.addf %5, %8 : vector<8x32xf32>
    %10 = arith.negf %9 : vector<8x32xf32>
    %11 = math.exp %10 : vector<8x32xf32>
    %cst_9 = arith.constant 1.000000e+00 : f32
    %12 = vector.broadcast %cst_9 : f32 to vector<8x32xf32>
    %13 = arith.addf %12, %11 : vector<8x32xf32>
    %14 = arith.divf %12, %13 : vector<8x32xf32>
    %c0_10 = arith.constant 0 : index
    %c1 = arith.constant 1 : index
    %c0_11 = arith.constant 0 : index
    %c0_12 = arith.constant 0 : index
    %15 = vector.load %arg1[%c0_10, %c1, %c0_11, %c0_12] : memref<1x4x8x32xf32, #tpu.memory_space<vmem>>, vector<1x1x8x32xf32>
    %16 = vector.shape_cast %15 : vector<1x1x8x32xf32> to vector<8x32xf32>
    %c0_13 = arith.constant 0 : index
    %c0_14 = arith.constant 0 : index
    %c0_15 = arith.constant 0 : index
    %17 = vector.load %arg4[%c0_13, %c0_14, %c0_15] : memref<3x32x32xf32, #tpu.memory_space<vmem>>, vector<1x32x32xf32>
    %18 = vector.shape_cast %17 : vector<1x32x32xf32> to vector<32x32xf32>
    %cst_16 = arith.constant dense<0.000000e+00> : vector<8x32xf32>
    %19 = tpu.matmul %14, %18, %cst_16 {dimension_numbers = #tpu.dot_dimension_numbers<[1], [0], [0], [1], [0, 0, 1, 1], [], []>} : vector<8x32xf32>, vector<32x32xf32>, vector<8x32xf32> -> vector<8x32xf32>
    %20 = arith.addf %16, %19 : vector<8x32xf32>
    %c1_17 = arith.constant 1 : index
    %c0_18 = arith.constant 0 : index
    %c0_19 = arith.constant 0 : index
    %21 = vector.load %arg3[%c1_17, %c0_18, %c0_19] : memref<4x32x32xf32, #tpu.memory_space<vmem>>, vector<1x32x32xf32>
    %22 = vector.shape_cast %21 : vector<1x32x32xf32> to vector<32x32xf32>
    %cst_20 = arith.constant dense<0.000000e+00> : vector<8x32xf32>
    %23 = tpu.matmul %3, %22, %cst_20 {dimension_numbers = #tpu.dot_dimension_numbers<[1], [0], [0], [1], [0, 0, 1, 1], [], []>} : vector<8x32xf32>, vector<32x32xf32>, vector<8x32xf32> -> vector<8x32xf32>
    %24 = arith.addf %20, %23 : vector<8x32xf32>
    %25 = arith.negf %24 : vector<8x32xf32>
    %26 = math.exp %25 : vector<8x32xf32>
    %cst_21 = arith.constant 1.000000e+00 : f32
    %27 = vector.broadcast %cst_21 : f32 to vector<8x32xf32>
    %28 = arith.addf %27, %26 : vector<8x32xf32>
    %29 = arith.divf %27, %28 : vector<8x32xf32>
    %c0_22 = arith.constant 0 : index
    %c2 = arith.constant 2 : index
    %c0_23 = arith.constant 0 : index
    %c0_24 = arith.constant 0 : index
    %30 = vector.load %arg1[%c0_22, %c2, %c0_23, %c0_24] : memref<1x4x8x32xf32, #tpu.memory_space<vmem>>, vector<1x1x8x32xf32>
    %31 = vector.shape_cast %30 : vector<1x1x8x32xf32> to vector<8x32xf32>
    %c1_25 = arith.constant 1 : index
    %c0_26 = arith.constant 0 : index
    %c0_27 = arith.constant 0 : index
    %32 = vector.load %arg4[%c1_25, %c0_26, %c0_27] : memref<3x32x32xf32, #tpu.memory_space<vmem>>, vector<1x32x32xf32>
    %33 = vector.shape_cast %32 : vector<1x32x32xf32> to vector<32x32xf32>
    %cst_28 = arith.constant dense<0.000000e+00> : vector<8x32xf32>
    %34 = tpu.matmul %14, %33, %cst_28 {dimension_numbers = #tpu.dot_dimension_numbers<[1], [0], [0], [1], [0, 0, 1, 1], [], []>} : vector<8x32xf32>, vector<32x32xf32>, vector<8x32xf32> -> vector<8x32xf32>
    %35 = arith.addf %31, %34 : vector<8x32xf32>
    %c2_29 = arith.constant 2 : index
    %c0_30 = arith.constant 0 : index
    %c0_31 = arith.constant 0 : index
    %36 = vector.load %arg3[%c2_29, %c0_30, %c0_31] : memref<4x32x32xf32, #tpu.memory_space<vmem>>, vector<1x32x32xf32>
    %37 = vector.shape_cast %36 : vector<1x32x32xf32> to vector<32x32xf32>
    %cst_32 = arith.constant dense<0.000000e+00> : vector<8x32xf32>
    %38 = tpu.matmul %3, %37, %cst_32 {dimension_numbers = #tpu.dot_dimension_numbers<[1], [0], [0], [1], [0, 0, 1, 1], [], []>} : vector<8x32xf32>, vector<32x32xf32>, vector<8x32xf32> -> vector<8x32xf32>
    %39 = arith.addf %35, %38 : vector<8x32xf32>
    %40 = arith.negf %39 : vector<8x32xf32>
    %41 = math.exp %40 : vector<8x32xf32>
    %cst_33 = arith.constant 1.000000e+00 : f32
    %42 = vector.broadcast %cst_33 : f32 to vector<8x32xf32>
    %43 = arith.addf %42, %41 : vector<8x32xf32>
    %44 = arith.divf %42, %43 : vector<8x32xf32>
    %c0_34 = arith.constant 0 : index
    %c3 = arith.constant 3 : index
    %c0_35 = arith.constant 0 : index
    %c0_36 = arith.constant 0 : index
    %45 = vector.load %arg1[%c0_34, %c3, %c0_35, %c0_36] : memref<1x4x8x32xf32, #tpu.memory_space<vmem>>, vector<1x1x8x32xf32>
    %46 = vector.shape_cast %45 : vector<1x1x8x32xf32> to vector<8x32xf32>
    %c2_37 = arith.constant 2 : index
    %c0_38 = arith.constant 0 : index
    %c0_39 = arith.constant 0 : index
    %47 = vector.load %arg4[%c2_37, %c0_38, %c0_39] : memref<3x32x32xf32, #tpu.memory_space<vmem>>, vector<1x32x32xf32>
    %48 = vector.shape_cast %47 : vector<1x32x32xf32> to vector<32x32xf32>
    %cst_40 = arith.constant dense<0.000000e+00> : vector<8x32xf32>
    %49 = tpu.matmul %14, %48, %cst_40 {dimension_numbers = #tpu.dot_dimension_numbers<[1], [0], [0], [1], [0, 0, 1, 1], [], []>} : vector<8x32xf32>, vector<32x32xf32>, vector<8x32xf32> -> vector<8x32xf32>
    %50 = arith.addf %46, %49 : vector<8x32xf32>
    %c3_41 = arith.constant 3 : index
    %c0_42 = arith.constant 0 : index
    %c0_43 = arith.constant 0 : index
    %51 = vector.load %arg3[%c3_41, %c0_42, %c0_43] : memref<4x32x32xf32, #tpu.memory_space<vmem>>, vector<1x32x32xf32>
    %52 = vector.shape_cast %51 : vector<1x32x32xf32> to vector<32x32xf32>
    %cst_44 = arith.constant dense<0.000000e+00> : vector<8x32xf32>
    %53 = tpu.matmul %3, %52, %cst_44 {dimension_numbers = #tpu.dot_dimension_numbers<[1], [0], [0], [1], [0, 0, 1, 1], [], []>} : vector<8x32xf32>, vector<32x32xf32>, vector<8x32xf32> -> vector<8x32xf32>
    %54 = arith.addf %50, %53 : vector<8x32xf32>
    %55 = arith.negf %54 : vector<8x32xf32>
    %56 = math.exp %55 : vector<8x32xf32>
    %cst_45 = arith.constant 1.000000e+00 : f32
    %57 = vector.broadcast %cst_45 : f32 to vector<8x32xf32>
    %58 = arith.addf %57, %56 : vector<8x32xf32>
    %59 = arith.divf %57, %58 : vector<8x32xf32>
    %60 = arith.addf %29, %44 : vector<8x32xf32>
    %61 = arith.addf %60, %59 : vector<8x32xf32>
    %c0_46 = arith.constant 0 : index
    %c0_47 = arith.constant 0 : index
    %62 = vector.load %arg7[%c0_46, %c0_47] : memref<8x32xf32, #tpu.memory_space<vmem>>, vector<8x32xf32>
    tpu.vector_store %arg7[%c0_46, %c0_47], %61 {strides = array<i32>} : memref<8x32xf32, #tpu.memory_space<vmem>>, vector<8x32xf32>,
    %c0_48 = arith.constant 0 : index
    %c0_49 = arith.constant 0 : index
    %c0_50 = arith.constant 0 : index
    %63 = vector.load %arg5[%c0_48, %c0_49, %c0_50] : memref<1x8x32xf32, #tpu.memory_space<vmem>>, vector<1x8x32xf32>
    %64 = vector.shape_cast %63 : vector<1x8x32xf32> to vector<8x32xf32>
    %65 = vector.shape_cast %44 : vector<8x32xf32> to vector<1x8x32xf32>
    tpu.vector_store %arg5[%c0_48, %c0_49, %c0_50], %65 {strides = array<i32>} : memref<1x8x32xf32, #tpu.memory_space<vmem>>, vector<1x8x32xf32>,
    %c15_i32 = arith.constant 15 : i32
    %66 = arith.cmpi eq, %arg0, %c15_i32 : i32
    %67 = arith.extui %66 : i1 to i32
    %c0_i32_51 = arith.constant 0 : i32
    %68 = arith.cmpi ne, %67, %c0_i32_51 : i32
    scf.if %68 {
      %c0_52 = arith.constant 0 : index
      %c0_53 = arith.constant 0 : index
      %69 = vector.load %arg6[%c0_52, %c0_53] : memref<8x32xf32, #tpu.memory_space<vmem>>, vector<8x32xf32>
      tpu.vector_store %arg6[%c0_52, %c0_53], %61 {strides = array<i32>} : memref<8x32xf32, #tpu.memory_space<vmem>>, vector<8x32xf32>,
    } else {
    }
    return
  }
  func.func @transform_0(%arg0: i32) -> (i32, i32, i32, i32) {
    %c0_i32 = arith.constant 0 : i32
    %c0_i32_0 = arith.constant 0 : i32
    %c0_i32_1 = arith.constant 0 : i32
    %c0_i32_2 = arith.constant 0 : i32
    return %arg0, %c0_i32, %c0_i32_0, %c0_i32_1 : i32, i32, i32, i32
  }
  func.func @transform_1(%arg0: i32) -> (i32, i32) {
    %c0_i32 = arith.constant 0 : i32
    %c0_i32_0 = arith.constant 0 : i32
    %c0_i32_1 = arith.constant 0 : i32
    return %c0_i32, %c0_i32_0 : i32, i32
  }
  func.func @transform_2(%arg0: i32) -> (i32, i32, i32) {
    %c0_i32 = arith.constant 0 : i32
    %c0_i32_0 = arith.constant 0 : i32
    %c0_i32_1 = arith.constant 0 : i32
    %c0_i32_2 = arith.constant 0 : i32
    return %c0_i32, %c0_i32_0, %c0_i32_1 : i32, i32, i32
  }
  func.func @transform_3(%arg0: i32) -> (i32, i32, i32) {
    %c0_i32 = arith.constant 0 : i32
    %c0_i32_0 = arith.constant 0 : i32
    %c0_i32_1 = arith.constant 0 : i32
    %c0_i32_2 = arith.constant 0 : i32
    return %c0_i32, %c0_i32_0, %c0_i32_1 : i32, i32, i32
  }
  func.func @transform_4(%arg0: i32) -> (i32, i32, i32) {
    %c0_i32 = arith.constant 0 : i32
    %c0_i32_0 = arith.constant 0 : i32
    %c0_i32_1 = arith.constant 0 : i32
    return %arg0, %c0_i32, %c0_i32_0 : i32, i32, i32
  }
  func.func @transform_5(%arg0: i32) -> (i32, i32) {
    %c0_i32 = arith.constant 0 : i32
    %c0_i32_0 = arith.constant 0 : i32
    %c0_i32_1 = arith.constant 0 : i32
    return %c0_i32, %c0_i32_0 : i32, i32
  }
}

</mosaic_0001>

<llo_original>
// kernel: passcell_2_v2_scan.1
$region0: #{passcell_2_v2_scan.1}
  #allocation0 [shape = 'u32[]', space=smem, size = 0x4, offset = 0x4, fixed_abs, tag = 'smem constant byte address 0x4 - core index']
  #allocation1 [shape = 'u32[72,128]{1,0:T(1,128)}', space=vmem, size = 0x9000, scoped, tag = 'internal scratch']
  #allocation2 [shape = 'f32[8,32]{1,0:T(8,128)}', space=vmem, size = 0x1000, scoped, tag = 'scratch operand']
  %s0 = inlined_call_operand.vmem [shape: f32[16,4,8,32], index: 0, kind: input, shape index: {}]
  %s1 = inlined_call_operand.vmem [shape: f32[8,32], index: 1, kind: input, shape index: {}]
  %s2 = inlined_call_operand.vmem [shape: f32[4,32,32], index: 2, kind: input, shape index: {}]
  %s3 = inlined_call_operand.vmem [shape: f32[3,32,32], index: 3, kind: input, shape index: {}]
  %s4 = inlined_call_operand.hbm [shape: f32[16,8,32], index: 4, kind: output, shape index: {0}]
  %s5 = inlined_call_operand.hbm [shape: f32[8,32], index: 5, kind: output, shape index: {1}]
  %6 = xla_tuple %s4, %s5
  %s7 = sld [smem:[#allocation0]]
  $region65: #{passcell_2_v2_scan.1} parent=0
    _
  %s9 = ssub.s32 1, %s7
  %s10 = scalar_select 0, %s9, %s7
  $region1: #{passcell_2_v2_scan.1} parent=0
    #allocation3 [shape = 'u8[8192]{0}', space=vmem, size = 0x2000, scoped, tag = 'output window, operand 0']
    #allocation4 [shape = 's32[2]{0}', space=sflag, size = 0x8, scoped, tag = 'scoped memory for passcell_2_v2_scan.1']
    #allocation5 [shape = 'u8[4096]{0}', space=vmem, size = 0x1000, scoped, tag = 'output window, operand 1, single buffered']
    #allocation6 [shape = 's32[1]{0}', space=sflag, size = 0x4, scoped, tag = 'scoped memory for passcell_2_v2_scan.1']
    %11 = vsyncpa [#allocation4], 0
    %s12 = scalar_lea.sflag [#allocation4], 1
    %13 = vsyncpa %s12, 0
    %14 = vsyncpa [#allocation6], 0
    loop: start=0, step=1, limit=18
    $region2: #{passcell_2_v2_scan.1} parent=1 // loop_pre_header
      _
    $region3: #{passcell_2_v2_scan.1} parent=1 // loop_header
      %s16 = sphi 0, %s20
      %p17 = scmp.ge.s32.totalorder %s16, 18
      %s26 = sphi 0, %s28
      %s29 = sphi 0, %s26
      %s30 = sphi 0, %s29
      %s46 = sphi 0, %s30
      %s50 = sphi 0, %s50
      %s52 = sphi 0, %s50
      %s53 = sphi 0, %s52
      %s67 = sphi 0, %s53
      %s71 = sphi 0, %s71
      %s73 = sphi 0, %s71
      %s74 = sphi 0, %s73
      %s88 = sphi 0, %s74
      %s92 = sphi 0, %s92
      %s94 = sphi 0, %s92
      %s95 = sphi 0, %s94
      %s109 = sphi 0, %s95
      %s115 = sphi 0, %s117
      %s118 = sphi 0, %s115
      %s119 = sphi 0, %s118
      %s135 = sphi 0, %s119
      %s139 = sphi 0, %s139
      %s141 = sphi 0, %s139
      %s142 = sphi 0, %s141
      %s156 = sphi 0, %s142
    $region4: #{passcell_2_v2_scan.1} parent=1 // loop_header_branch
      %19 = sbr.rel (%p17) target = $region8
    $region5: #{passcell_2_v2_scan.1} parent=1 // loop_body
      %s21 = ssub.s32 %s16, 1
      %s22 = ssub.s32 %s16, 2
      %s23 = sadd.s32 %s16, 1
      %s24 = ssub.s32 %s16, %s23
      %p25 = scmp.eq.s32.totalorder %s24, 0
      %s27 = sadd.s32 %s26, 1
      %s28 = scalar_select %p25, %s26, %s27
      %p31 = pneg %p25
      %p32 = scmp.eq.s32.totalorder %s16, 15
      %p33 = por %p31, %p32
      %p34 = scmp.ne.s32.totalorder %s26, %s29
      %p35 = scmp.eq.s32.totalorder %s16, 0
      %p36 = por %p34, %p35
      %p37 = scmp.ne.s32.totalorder %s26, %s29
      %p38 = scmp.eq.s32.totalorder %s21, 15
      %p39 = por %p37, %p38
      %p40 = scmp.ne.s32.totalorder %s29, %s30
      %p41 = scmp.eq.s32.totalorder %s21, 0
      %p42 = por %p40, %p41
      %p43 = scmp.ne.s32.totalorder %s29, %s30
      %p44 = scmp.eq.s32.totalorder %s22, 15
      %p45 = por %p43, %p44
      %p47 = scmp.ne.s32.totalorder %s30, %s46
      %p48 = scmp.eq.s32.totalorder %s22, 0
      %p49 = por %p47, %p48
      %s51 = sadd.s32 %s50, 1
      %p54 = scmp.eq.s32.totalorder %s16, 15
      %p55 = scmp.ne.s32.totalorder %s50, %s52
      %p56 = scmp.eq.s32.totalorder %s16, 0
      %p57 = por %p55, %p56
      %p58 = scmp.ne.s32.totalorder %s50, %s52
      %p59 = scmp.eq.s32.totalorder %s21, 15
      %p60 = por %p58, %p59
      %p61 = scmp.ne.s32.totalorder %s52, %s53
      %p62 = scmp.eq.s32.totalorder %s21, 0
      %p63 = por %p61, %p62
      %p64 = scmp.ne.s32.totalorder %s52, %s53
      %p65 = scmp.eq.s32.totalorder %s22, 15
      %p66 = por %p64, %p65
      %p68 = scmp.ne.s32.totalorder %s53, %s67
      %p69 = scmp.eq.s32.totalorder %s22, 0
      %p70 = por %p68, %p69
      %s72 = sadd.s32 %s71, 1
      %p75 = scmp.eq.s32.totalorder %s16, 15
      %p76 = scmp.ne.s32.totalorder %s71, %s73
      %p77 = scmp.eq.s32.totalorder %s16, 0
      %p78 = por %p76, %p77
      %p79 = scmp.ne.s32.totalorder %s71, %s73
      %p80 = scmp.eq.s32.totalorder %s21, 15
      %p81 = por %p79, %p80
      %p82 = scmp.ne.s32.totalorder %s73, %s74
      %p83 = scmp.eq.s32.totalorder %s21, 0
      %p84 = por %p82, %p83
      %p85 = scmp.ne.s32.totalorder %s73, %s74
      %p86 = scmp.eq.s32.totalorder %s22, 15
      %p87 = por %p85, %p86
      %p89 = scmp.ne.s32.totalorder %s74, %s88
      %p90 = scmp.eq.s32.totalorder %s22, 0
      %p91 = por %p89, %p90
      %s93 = sadd.s32 %s92, 1
      %p96 = scmp.eq.s32.totalorder %s16, 15
      %p97 = scmp.ne.s32.totalorder %s92, %s94
      %p98 = scmp.eq.s32.totalorder %s16, 0
      %p99 = por %p97, %p98
      %p100 = scmp.ne.s32.totalorder %s92, %s94
      %p101 = scmp.eq.s32.totalorder %s21, 15
      %p102 = por %p100, %p101
      %p103 = scmp.ne.s32.totalorder %s94, %s95
      %p104 = scmp.eq.s32.totalorder %s21, 0
      %p105 = por %p103, %p104
      %p106 = scmp.ne.s32.totalorder %s94, %s95
      %p107 = scmp.eq.s32.totalorder %s22, 15
      %p108 = por %p106, %p107
      %p110 = scmp.ne.s32.totalorder %s95, %s109
      %p111 = scmp.eq.s32.totalorder %s22, 0
      %p112 = por %p110, %p111
      %s113 = ssub.s32 %s16, %s23
      %p114 = scmp.eq.s32.totalorder %s113, 0
      %s116 = sadd.s32 %s115, 1
      %s117 = scalar_select %p114, %s115, %s116
      %p120 = pneg %p114
      %p121 = scmp.eq.s32.totalorder %s16, 15
      %p122 = por %p120, %p121
      %p123 = scmp.ne.s32.totalorder %s115, %s118
      %p124 = scmp.eq.s32.totalorder %s16, 0
      %p125 = por %p123, %p124
      %p126 = scmp.ne.s32.totalorder %s115, %s118
      %p127 = scmp.eq.s32.totalorder %s21, 15
      %p128 = por %p126, %p127
      %p129 = scmp.ne.s32.totalorder %s118, %s119
      %p130 = scmp.eq.s32.totalorder %s21, 0
      %p131 = por %p129, %p130
      %p132 = scmp.ne.s32.totalorder %s118, %s119
      %p133 = scmp.eq.s32.totalorder %s22, 15
      %p134 = por %p132, %p133
      %p136 = scmp.ne.s32.totalorder %s119, %s135
      %p137 = scmp.eq.s32.totalorder %s22, 0
      %p138 = por %p136, %p137
      %s140 = sadd.s32 %s139, 1
      %p143 = scmp.eq.s32.totalorder %s16, 15
      %p144 = scmp.ne.s32.totalorder %s139, %s141
      %p145 = scmp.eq.s32.totalorder %s16, 0
      %p146 = por %p144, %p145
      %p147 = scmp.ne.s32.totalorder %s139, %s141
      %p148 = scmp.eq.s32.totalorder %s21, 15
      %p149 = por %p147, %p148
      %p150 = scmp.ne.s32.totalorder %s141, %s142
      %p151 = scmp.eq.s32.totalorder %s21, 0
      %p152 = por %p150, %p151
      %p153 = scmp.ne.s32.totalorder %s141, %s142
      %p154 = scmp.eq.s32.totalorder %s22, 15
      %p155 = por %p153, %p154
      %p157 = scmp.ne.s32.totalorder %s142, %s156
      %p158 = scmp.eq.s32.totalorder %s22, 0
      %p159 = por %p157, %p158
      %p160 = scmp.le.s32.totalorder 1, %s16
      %p161 = scmp.lt.s32.totalorder %s16, 17
      %p162 = pnand %p160, %p161
      %p163 = pneg %p162
      // Predicated region
      $region9: #{passcell_2_v2_scan.1} parent=5 // pred_check
        _
      $region10: #{passcell_2_v2_scan.1} parent=5 // pred_check_branch
        %165 = sbr.rel (%p162) target = $region12
      $region11: #{passcell_2_v2_scan.1} parent=5 // pred_region
        %s166 = ssub.s32 %s16, 1
        // Predicated region
        $region13: #{passcell_2_v2_scan.1} parent=11 // pred_check
          %p167 = pneg %p63
        $region14: #{passcell_2_v2_scan.1} parent=11 // pred_check_branch
          %169 = sbr.rel (%p167) target = $region16
        $region15: #{passcell_2_v2_scan.1} parent=11 // pred_region
          _
        $region16: #{passcell_2_v2_scan.1} parent=11 // pred_fallthru
          _
        // Predicated region
        $region17: #{passcell_2_v2_scan.1} parent=11 // pred_check
          %p170 = pneg %p84
        $region18: #{passcell_2_v2_scan.1} parent=11 // pred_check_branch
          %172 = sbr.rel (%p170) target = $region20
        $region19: #{passcell_2_v2_scan.1} parent=11 // pred_region
          _
        $region20: #{passcell_2_v2_scan.1} parent=11 // pred_fallthru
          _
        // Predicated region
        $region21: #{passcell_2_v2_scan.1} parent=11 // pred_check
          %p173 = pneg %p105
        $region22: #{passcell_2_v2_scan.1} parent=11 // pred_check_branch
          %175 = sbr.rel (%p173) target = $region24
        $region23: #{passcell_2_v2_scan.1} parent=11 // pred_region
          _
        $region24: #{passcell_2_v2_scan.1} parent=11 // pred_fallthru
          _
      $region12: #{passcell_2_v2_scan.1} parent=5 // pred_fallthru
        _
      %p176 = scmp.lt.s32.totalorder %s16, 16
      // Predicated region
      $region25: #{passcell_2_v2_scan.1} parent=5 // pred_check
        %p177 = pneg %p176
      $region26: #{passcell_2_v2_scan.1} parent=5 // pred_check_branch
        %179 = sbr.rel (%p177) target = $region28
      $region27: #{passcell_2_v2_scan.1} parent=5 // pred_region
        // Predicated region
        $region29: #{passcell_2_v2_scan.1} parent=27 // pred_check
          %p180 = pneg %p36
        $region30: #{passcell_2_v2_scan.1} parent=27 // pred_check_branch
          %182 = sbr.rel (%p180) target = $region32
        $region31: #{passcell_2_v2_scan.1} parent=27 // pred_region
          %p183 = scmp.lt.s32.totalorder %s16, 15
          %s184 = scalar_select %p183, %s16, 15
          %s185 = smul.addr %s184, 4
          %s186 = smul.addr %s185, 8
          %s187 = scalar_lea.vmem %s0, %s186
        $region32: #{passcell_2_v2_scan.1} parent=27 // pred_fallthru
          _
      $region28: #{passcell_2_v2_scan.1} parent=5 // pred_fallthru
        _
      %p188 = scmp.le.s32.totalorder 1, %s16
      %p189 = scmp.lt.s32.totalorder %s16, 17
      %p190 = pnand %p188, %p189
      %p191 = pneg %p190
      // Predicated region
      $region33: #{passcell_2_v2_scan.1} parent=5 // pred_check
        _
      $region34: #{passcell_2_v2_scan.1} parent=5 // pred_check_branch
        %193 = sbr.rel (%p190) target = $region36
      $region35: #{passcell_2_v2_scan.1} parent=5 // pred_region
        %s194 = ssub.s32 %s16, 1
        %p195 = scmp.lt.s32.totalorder %s21, 15
        %s196 = scalar_select %p195, %s21, 15
        %s197 = smul.addr %s196, 4
        %s198 = smul.addr %s197, 8
        %s199 = scalar_lea.vmem %s0, %s198
        %p200 = pneg %p42
        %p201 = pneg %p39
        %p202 = pneg %p63
        %p203 = pneg %p60
        %p204 = pneg %p84
        %p205 = pneg %p81
        %p206 = pneg %p105
        %p207 = pneg %p102
        %p208 = pneg %p131
        %p209 = pneg %p128
        %s210 = sand.u32 %s118, 1
        %s211 = scalar_lea.sflag [#allocation4], %s210
        %s212 = sand.u32 %s118, 1
        %s213 = smul.addr %s212, 8
        %s214 = scalar_lea.vmem [#allocation3], %s213
        %p215 = pneg %p152
        %p216 = pneg %p149
        %p217 = scmp.lt.s32.totalorder %s21, 15
        %s218 = scalar_select %p217, %s21, 15
        %s219 = smul.addr %s218, 4
        %s220 = smul.addr %s219, 8
        %s221 = scalar_lea.vmem %s0, %s220
        %p222 = scmp.eq.s32.totalorder %s21, 0
        // Predicated region
        $region37: #{passcell_2_v2_scan.1} parent=35 // pred_check
          %p223 = pneg %p222
        $region38: #{passcell_2_v2_scan.1} parent=35 // pred_check_branch
          %225 = sbr.rel (%p223) target = $region40
        $region39: #{passcell_2_v2_scan.1} parent=35 // pred_region
          %v226 = vld [vmem:[%s1] sm:$0xff]
          %vm227 = vcmask 261120
          %228 = vst.msk [vmem:[#allocation2] sm:$0xff] %vm227, %v226
        $region40: #{passcell_2_v2_scan.1} parent=35 // pred_fallthru
          _
        %v229 = vld [vmem:[#allocation2] sm:$0xff]
        %v230 = vld [vmem:[%s221] sm:$0xff]
        %v231 = vld [vmem:[%s2] sm:$0xff]
        %v232 = vld [vmem:[%s2 + $0x8] sm:$0xff]
        %v233 = vld [vmem:[%s2 + $0x10] sm:$0xff]
        %v234 = vld [vmem:[%s2 + $0x18] sm:$0xff]
        %vm235 = vcmask 261120
        %v237 = vsel %vm235, %v229, 0
        %239 = vmatpush.msra.mxu0 0.0
        %240 = vmatpush.msra.mxu0 0.0
        %241 = vmatpush.msra.mxu0 0.0
        %242 = vmatpush.msra.mxu0 0.0
        %243 = vmatpush.msra.mxu0 0.0
        %244 = vmatpush.msra.mxu0 0.0
        %245 = vmatpush.msra.mxu0 0.0
        %246 = vmatpush.msra.mxu0 0.0
        %247 = vmatpush.msra.mxu0 0.0
        %248 = vmatpush.msra.mxu0 0.0
        %249 = vmatpush.msra.mxu0 0.0
        %250 = vmatpush.msra.mxu0 0.0
        %251 = vmatpush.msra.mxu0 %v234
        %252 = vmatpush.msra.mxu0 %v233
        %253 = vmatpush.msra.mxu0 %v232
        %254 = vmatpush.msra.mxu0 %v231
        %255 = vmatmul.f32.gmra.mxu0 %v237
        %v256 = vpop.f32.mrf.mxu0
        %v257 = vadd.f32 0.0, %v256
        %258 = vdwg.mxu0
        %v259 = vadd.f32 %v230, %v257
        %v260 = vxor.u32 %v259, 2147483648
        %v261 = vmul.f32 %v260, 1.442695
        %v262 = vpow.pop %v261
        %v263 = vadd.f32 %v262, 1.0
        %v264 = vrcp.pop %v263
        %v265 = vmul.f32 %v263, %v264
        %v266 = vsub.f32 1.0, %v265
        %v267 = vmul.f32 %v264, %v266
        %v268 = vadd.f32 %v264, %v267
        %vm269 = vweird.f32 %v263
        %vm270 = vweird.f32 %v264
        %vm271 = vmor %vm269, %vm270
        %v272 = vsel %vm271, %v264, %v268
        %v273 = vand.u32 2147483647, %v263
        %vm274 = vcmp.eq.f32.partialorder %v273, 8.507059e+37
        %v275 = vand.u32 %v263, 2147483648
        %v276 = vor.u32 1.1754944e-38, %v275
        %v277 = vsel %vm274, %v276, %v272
        %v278 = vmul.f32 1.0, %v277
        %s279 = scalar_lea.vmem %s221, 8
        %v280 = vld [vmem:[%s279] sm:$0xff]
        %v281 = vld [vmem:[%s3] sm:$0xff]
        %v282 = vld [vmem:[%s3 + $0x8] sm:$0xff]
        %v283 = vld [vmem:[%s3 + $0x10] sm:$0xff]
        %v284 = vld [vmem:[%s3 + $0x18] sm:$0xff]
        %v286 = vsel %vm235, %v278, 0
        %288 = vmatpush.msra.mxu0 0.0
        %289 = vmatpush.msra.mxu0 0.0
        %290 = vmatpush.msra.mxu0 0.0
        %291 = vmatpush.msra.mxu0 0.0
        %292 = vmatpush.msra.mxu0 0.0
        %293 = vmatpush.msra.mxu0 0.0
        %294 = vmatpush.msra.mxu0 0.0
        %295 = vmatpush.msra.mxu0 0.0
        %296 = vmatpush.msra.mxu0 0.0
        %297 = vmatpush.msra.mxu0 0.0
        %298 = vmatpush.msra.mxu0 0.0
        %299 = vmatpush.msra.mxu0 0.0
        %300 = vmatpush.msra.mxu0 %v284
        %301 = vmatpush.msra.mxu0 %v283
        %302 = vmatpush.msra.mxu0 %v282
        %303 = vmatpush.msra.mxu0 %v281
        %304 = vmatmul.f32.gmra.mxu0 %v286
        %v305 = vpop.f32.mrf.mxu0
        %v306 = vadd.f32 0.0, %v305
        %307 = vdwg.mxu0
        %v308 = vadd.f32 %v280, %v306
        %s309 = scalar_lea.vmem %s2, 32
        %v310 = vld [vmem:[%s309] sm:$0xff]
        %v311 = vld [vmem:[%s309 + $0x8] sm:$0xff]
        %v312 = vld [vmem:[%s309 + $0x10] sm:$0xff]
        %v313 = vld [vmem:[%s309 + $0x18] sm:$0xff]
        %314 = vmatpush.msra.mxu0 0.0
        %315 = vmatpush.msra.mxu0 0.0
        %316 = vmatpush.msra.mxu0 0.0
        %317 = vmatpush.msra.mxu0 0.0
        %318 = vmatpush.msra.mxu0 0.0
        %319 = vmatpush.msra.mxu0 0.0
        %320 = vmatpush.msra.mxu0 0.0
        %321 = vmatpush.msra.mxu0 0.0
        %322 = vmatpush.msra.mxu0 0.0
        %323 = vmatpush.msra.mxu0 0.0
        %324 = vmatpush.msra.mxu0 0.0
        %325 = vmatpush.msra.mxu0 0.0
        %326 = vmatpush.msra.mxu0 %v313
        %327 = vmatpush.msra.mxu0 %v312
        %328 = vmatpush.msra.mxu0 %v311
        %329 = vmatpush.msra.mxu0 %v310
        %330 = vmatmul.f32.gmra.mxu0 %v237
        %v331 = vpop.f32.mrf.mxu0
        %v332 = vadd.f32 0.0, %v331
        %333 = vdwg.mxu0
        %v334 = vadd.f32 %v308, %v332
        %v335 = vxor.u32 %v334, 2147483648
        %v336 = vmul.f32 %v335, 1.442695
        %v337 = vpow.pop %v336
        %v338 = vadd.f32 %v337, 1.0
        %v339 = vrcp.pop %v338
        %v340 = vmul.f32 %v338, %v339
        %v341 = vsub.f32 1.0, %v340
        %v342 = vmul.f32 %v339, %v341
        %v343 = vadd.f32 %v339, %v342
        %vm344 = vweird.f32 %v338
        %vm345 = vweird.f32 %v339
        %vm346 = vmor %vm344, %vm345
        %v347 = vsel %vm346, %v339, %v343
        %v348 = vand.u32 2147483647, %v338
        %vm349 = vcmp.eq.f32.partialorder %v348, 8.507059e+37
        %v350 = vand.u32 %v338, 2147483648
        %v351 = vor.u32 1.1754944e-38, %v350
        %v352 = vsel %vm349, %v351, %v347
        %v353 = vmul.f32 1.0, %v352
        %s354 = scalar_lea.vmem %s221, 16
        %v355 = vld [vmem:[%s354] sm:$0xff]
        %s356 = scalar_lea.vmem %s3, 32
        %v357 = vld [vmem:[%s356] sm:$0xff]
        %v358 = vld [vmem:[%s356 + $0x8] sm:$0xff]
        %v359 = vld [vmem:[%s356 + $0x10] sm:$0xff]
        %v360 = vld [vmem:[%s356 + $0x18] sm:$0xff]
        %361 = vmatpush.msra.mxu0 0.0
        %362 = vmatpush.msra.mxu0 0.0
        %363 = vmatpush.msra.mxu0 0.0
        %364 = vmatpush.msra.mxu0 0.0
        %365 = vmatpush.msra.mxu0 0.0
        %366 = vmatpush.msra.mxu0 0.0
        %367 = vmatpush.msra.mxu0 0.0
        %368 = vmatpush.msra.mxu0 0.0
        %369 = vmatpush.msra.mxu0 0.0
        %370 = vmatpush.msra.mxu0 0.0
        %371 = vmatpush.msra.mxu0 0.0
        %372 = vmatpush.msra.mxu0 0.0
        %373 = vmatpush.msra.mxu0 %v360
        %374 = vmatpush.msra.mxu0 %v359
        %375 = vmatpush.msra.mxu0 %v358
        %376 = vmatpush.msra.mxu0 %v357
        %377 = vmatmul.f32.gmra.mxu0 %v286
        %v378 = vpop.f32.mrf.mxu0
        %v379 = vadd.f32 0.0, %v378
        %380 = vdwg.mxu0
        %v381 = vadd.f32 %v355, %v379
        %s382 = scalar_lea.vmem %s2, 64
        %v383 = vld [vmem:[%s382] sm:$0xff]
        %v384 = vld [vmem:[%s382 + $0x8] sm:$0xff]
        %v385 = vld [vmem:[%s382 + $0x10] sm:$0xff]
        %v386 = vld [vmem:[%s382 + $0x18] sm:$0xff]
        %387 = vmatpush.msra.mxu0 0.0
        %388 = vmatpush.msra.mxu0 0.0
        %389 = vmatpush.msra.mxu0 0.0
        %390 = vmatpush.msra.mxu0 0.0
        %391 = vmatpush.msra.mxu0 0.0
        %392 = vmatpush.msra.mxu0 0.0
        %393 = vmatpush.msra.mxu0 0.0
        %394 = vmatpush.msra.mxu0 0.0
        %395 = vmatpush.msra.mxu0 0.0
        %396 = vmatpush.msra.mxu0 0.0
        %397 = vmatpush.msra.mxu0 0.0
        %398 = vmatpush.msra.mxu0 0.0
        %399 = vmatpush.msra.mxu0 %v386
        %400 = vmatpush.msra.mxu0 %v385
        %401 = vmatpush.msra.mxu0 %v384
        %402 = vmatpush.msra.mxu0 %v383
        %403 = vmatmul.f32.gmra.mxu0 %v237
        %v404 = vpop.f32.mrf.mxu0
        %v405 = vadd.f32 0.0, %v404
        %406 = vdwg.mxu0
        %v407 = vadd.f32 %v381, %v405
        %v408 = vxor.u32 %v407, 2147483648
        %v409 = vmul.f32 %v408, 1.442695
        %v410 = vpow.pop %v409
        %v411 = vadd.f32 %v410, 1.0
        %v412 = vrcp.pop %v411
        %v413 = vmul.f32 %v411, %v412
        %v414 = vsub.f32 1.0, %v413
        %v415 = vmul.f32 %v412, %v414
        %v416 = vadd.f32 %v412, %v415
        %vm417 = vweird.f32 %v411
        %vm418 = vweird.f32 %v412
        %vm419 = vmor %vm417, %vm418
        %v420 = vsel %vm419, %v412, %v416
        %v421 = vand.u32 2147483647, %v411
        %vm422 = vcmp.eq.f32.partialorder %v421, 8.507059e+37
        %v423 = vand.u32 %v411, 2147483648
        %v424 = vor.u32 1.1754944e-38, %v423
        %v425 = vsel %vm422, %v424, %v420
        %v426 = vmul.f32 1.0, %v425
        %s427 = scalar_lea.vmem %s221, 24
        %v428 = vld [vmem:[%s427] sm:$0xff]
        %s429 = scalar_lea.vmem %s3, 64
        %v430 = vld [vmem:[%s429] sm:$0xff]
        %v431 = vld [vmem:[%s429 + $0x8] sm:$0xff]
        %v432 = vld [vmem:[%s429 + $0x10] sm:$0xff]
        %v433 = vld [vmem:[%s429 + $0x18] sm:$0xff]
        %434 = vmatpush.msra.mxu0 0.0
        %435 = vmatpush.msra.mxu0 0.0
        %436 = vmatpush.msra.mxu0 0.0
        %437 = vmatpush.msra.mxu0 0.0
        %438 = vmatpush.msra.mxu0 0.0
        %439 = vmatpush.msra.mxu0 0.0
        %440 = vmatpush.msra.mxu0 0.0
        %441 = vmatpush.msra.mxu0 0.0
        %442 = vmatpush.msra.mxu0 0.0
        %443 = vmatpush.msra.mxu0 0.0
        %444 = vmatpush.msra.mxu0 0.0
        %445 = vmatpush.msra.mxu0 0.0
        %446 = vmatpush.msra.mxu0 %v433
        %447 = vmatpush.msra.mxu0 %v432
        %448 = vmatpush.msra.mxu0 %v431
        %449 = vmatpush.msra.mxu0 %v430
        %450 = vmatmul.f32.gmra.mxu0 %v286
        %v451 = vpop.f32.mrf.mxu0
        %v452 = vadd.f32 0.0, %v451
        %453 = vdwg.mxu0
        %v454 = vadd.f32 %v428, %v452
        %s455 = scalar_lea.vmem %s2, 96
        %v456 = vld [vmem:[%s455] sm:$0xff]
        %v457 = vld [vmem:[%s455 + $0x8] sm:$0xff]
        %v458 = vld [vmem:[%s455 + $0x10] sm:$0xff]
        %v459 = vld [vmem:[%s455 + $0x18] sm:$0xff]
        %460 = vmatpush.msra.mxu0 0.0
        %461 = vmatpush.msra.mxu0 0.0
        %462 = vmatpush.msra.mxu0 0.0
        %463 = vmatpush.msra.mxu0 0.0
        %464 = vmatpush.msra.mxu0 0.0
        %465 = vmatpush.msra.mxu0 0.0
        %466 = vmatpush.msra.mxu0 0.0
        %467 = vmatpush.msra.mxu0 0.0
        %468 = vmatpush.msra.mxu0 0.0
        %469 = vmatpush.msra.mxu0 0.0
        %470 = vmatpush.msra.mxu0 0.0
        %471 = vmatpush.msra.mxu0 0.0
        %472 = vmatpush.msra.mxu0 %v459
        %473 = vmatpush.msra.mxu0 %v458
        %474 = vmatpush.msra.mxu0 %v457
        %475 = vmatpush.msra.mxu0 %v456
        %476 = vmatmul.f32.gmra.mxu0 %v237
        %v477 = vpop.f32.mrf.mxu0
        %v478 = vadd.f32 0.0, %v477
        %479 = vdwg.mxu0
        %v480 = vadd.f32 %v454, %v478
        %v481 = vxor.u32 %v480, 2147483648
        %v482 = vmul.f32 %v481, 1.442695
        %v483 = vpow.pop %v482
        %v484 = vadd.f32 %v483, 1.0
        %v485 = vrcp.pop %v484
        %v486 = vmul.f32 %v484, %v485
        %v487 = vsub.f32 1.0, %v486
        %v488 = vmul.f32 %v485, %v487
        %v489 = vadd.f32 %v485, %v488
        %vm490 = vweird.f32 %v484
        %vm491 = vweird.f32 %v485
        %vm492 = vmor %vm490, %vm491
        %v493 = vsel %vm492, %v485, %v489
        %v494 = vand.u32 2147483647, %v484
        %vm495 = vcmp.eq.f32.partialorder %v494, 8.507059e+37
        %v496 = vand.u32 %v484, 2147483648
        %v497 = vor.u32 1.1754944e-38, %v496
        %v498 = vsel %vm495, %v497, %v493
        %v499 = vmul.f32 1.0, %v498
        %v500 = vadd.f32 %v353, %v426
        %v501 = vadd.f32 %v500, %v499
        %502 = vst.msk [vmem:[#allocation2] sm:$0xff] %vm235, %v501
        %503 = vst.msk [vmem:[%s214] sm:$0xff] %vm235, %v426
        %p504 = scmp.eq.s32.totalorder %s21, 15
        // Predicated region
        $region41: #{passcell_2_v2_scan.1} parent=35 // pred_check
          %p505 = pneg %p504
        $region42: #{passcell_2_v2_scan.1} parent=35 // pred_check_branch
          %507 = sbr.rel (%p505) target = $region44
        $region43: #{passcell_2_v2_scan.1} parent=35 // pred_region
          %508 = vst.msk [vmem:[#allocation5] sm:$0xff] %vm235, %v501
        $region44: #{passcell_2_v2_scan.1} parent=35 // pred_fallthru
          _
        %s509 = sand.u32 %s118, 1
        %s510 = scalar_lea.sflag [#allocation4], %s509
        %s511 = sand.u32 %s118, 1
        %s512 = smul.addr %s511, 8
        %s513 = scalar_lea.vmem [#allocation3], %s512
        // Predicated region
        $region45: #{passcell_2_v2_scan.1} parent=35 // pred_check
          %p514 = pneg %p128
        $region46: #{passcell_2_v2_scan.1} parent=35 // pred_check_branch
          %516 = sbr.rel (%p514) target = $region48
        $region47: #{passcell_2_v2_scan.1} parent=35 // pred_region
          %518 = vsyncadd %s510, 0
          %s519 = smul.addr %s21, 8
          %s520 = scalar_lea.hbm %s4, %s519
          %s522 = sshll.u32 %s513, 4
          %s523 = int_to_ptr.vmem [resolvable:$true] %s522
          %s524 = sshll.u32 %s520, 4
          %s525 = int_to_ptr.hbm [resolvable:$true] %s524
          %527 = dma.vmem_to_hbm [thread:$0]  %s523, 128, %s525, %s510
        $region48: #{passcell_2_v2_scan.1} parent=35 // pred_fallthru
          _
        // Predicated region
        $region49: #{passcell_2_v2_scan.1} parent=35 // pred_check
          %p528 = pneg %p149
        $region50: #{passcell_2_v2_scan.1} parent=35 // pred_check_branch
          %530 = sbr.rel (%p528) target = $region52
        $region51: #{passcell_2_v2_scan.1} parent=35 // pred_region
          %532 = vsyncadd [#allocation6], 0
          %s534 = sshll.u32 [#allocation5], 4
          %s535 = int_to_ptr.vmem [resolvable:$true] %s534
          %s536 = sshll.u32 %s5, 4
          %s537 = int_to_ptr.hbm [resolvable:$true] %s536
          %539 = dma.vmem_to_hbm [thread:$0]  %s535, 128, %s537, [#allocation6]
        $region52: #{passcell_2_v2_scan.1} parent=35 // pred_fallthru
          _
        // Predicated region
        $region53: #{passcell_2_v2_scan.1} parent=35 // pred_check
          %p540 = pneg %p149
        $region54: #{passcell_2_v2_scan.1} parent=35 // pred_check_branch
          %542 = sbr.rel (%p540) target = $region56
        $region55: #{passcell_2_v2_scan.1} parent=35 // pred_region
          %544 = dma.done [#allocation6], 128
        $region56: #{passcell_2_v2_scan.1} parent=35 // pred_fallthru
          _
      $region36: #{passcell_2_v2_scan.1} parent=5 // pred_fallthru
        _
      %p545 = scmp.le.s32.totalorder 2, %s16
      // Predicated region
      $region57: #{passcell_2_v2_scan.1} parent=5 // pred_check
        %p546 = pneg %p545
      $region58: #{passcell_2_v2_scan.1} parent=5 // pred_check_branch
        %548 = sbr.rel (%p546) target = $region60
      $region59: #{passcell_2_v2_scan.1} parent=5 // pred_region
        %s549 = ssub.s32 %s16, 2
        // Predicated region
        $region61: #{passcell_2_v2_scan.1} parent=59 // pred_check
          %p550 = pneg %p134
        $region62: #{passcell_2_v2_scan.1} parent=59 // pred_check_branch
          %552 = sbr.rel (%p550) target = $region64
        $region63: #{passcell_2_v2_scan.1} parent=59 // pred_region
          %s553 = sand.u32 %s119, 1
          %s554 = scalar_lea.sflag [#allocation4], %s553
          %s555 = sand.u32 %s119, 1
          %s556 = smul.addr %s555, 8
          %s557 = scalar_lea.vmem [#allocation3], %s556
          %559 = dma.done %s554, 128
        $region64: #{passcell_2_v2_scan.1} parent=59 // pred_fallthru
          _
      $region60: #{passcell_2_v2_scan.1} parent=5 // pred_fallthru
        _
    $region6: #{passcell_2_v2_scan.1} parent=1 // loop_footer
      %s20 = sadd.s32 1, %s16
    $region7: #{passcell_2_v2_scan.1} parent=1 // loop_footer_branch
      %15 = sbr.rel target = $region3
    $region8: #{passcell_2_v2_scan.1} parent=1 // loop_exit
      _
    %560 = vsyncpa [#allocation4], 1
    %s561 = scalar_lea.sflag [#allocation4], 1
    %562 = vsyncpa %s561, 1
    %563 = vsyncpa [#allocation6], 1

</llo_original>
